<compile_context>
chip_gen: v7x
topology: tpu7x:2x2x1
jax: 0.10.0
libtpu: 0.0.40
codegen_flags: <defaults>
</compile_context>

<pallas_src>
import functools

import jax
import jax.numpy as jnp
import numpy as np
from jax import lax
from jax.experimental import pallas as pl
from jax.experimental.pallas import tpu as pltpu


def _round_up(x, m):
    return ((x + m - 1) // m) * m


def _cdiv(a, b):
    return -(-a // b)


def _score_kernel(loc1_ref, loc2_ref, inv_ref, out_ref, *, eps_tp, gamma, inv_alpha):
    # loc1/loc2: [tp, bs, bl] int32; inv: [bs, bl] f32 (= 1/(tp*log(ap)));
    # out: [bs, bl] f32.
    x = loc1_ref[...] ^ loc2_ref[...]                       # int32, in [0, 2**24)

    # bit_length(x): float32(x) is exact for x < 2**24, so its biased exponent
    # field is 127 + floor(log2 x) for x > 0, i.e. (bits >> 23) - 126 equals
    # bit_length(x).  For x == 0 the expression is -126; max with 0 fixes it.
    xf = x.astype(jnp.float32)
    e = (pltpu.bitcast(xf, jnp.int32) >> 23) - 126
    dis = jnp.maximum(e, 0)                                 # int32 bit_length

    # Sum over the tp replicas (leading axis of the 3-D tile): plain VALU adds
    # between fully packed [bs, bl] vreg slabs, no cross-sublane XLU traffic.
    dis_sum = jnp.sum(dis, axis=0).astype(jnp.float32)      # exact (<= tp*h)

    # (dis_mean + eps) / log(ap)  ==  (dis_sum + eps*tp) * (1 / (tp*log(ap)))
    aa = (dis_sum + eps_tp) * inv_ref[...]

    ig = int(gamma)
    if float(gamma) == ig and 1 <= ig <= 4:
        pw = aa
        for _ in range(ig - 1):                             # gamma=2 -> aa*aa (VPU)
            pw = pw * aa
    else:
        pw = jnp.power(aa, gamma)
    out_ref[...] = 1.0 / (1.0 + pw * inv_alpha)


def _score_xla(locations_t, degree, src, dst, *, eps, gamma, alpha):
    """Fused pure-XLA path for small batches (no kernel launch)."""
    x = locations_t[:, src] ^ locations_t[:, dst]           # [tp, N] int32
    xf = x.astype(jnp.float32)
    e = (lax.bitcast_convert_type(xf, jnp.int32) >> 23) - 126
    dis = jnp.maximum(e, 0).astype(jnp.float32)
    dis_mean = jnp.mean(dis, axis=0)
    log_ap = (jnp.log((degree[src] + 1).astype(jnp.float32))
              + jnp.log((degree[dst] + 1).astype(jnp.float32)))
    aa = (dis_mean + eps) / log_ap
    return 1.0 / (1.0 + aa ** gamma / alpha)


def critigraph_score(locations_t, degree, src, dst, *, h, eps, gamma, alpha,
                     lane_width=512, max_block_edges=None, use_pallas=None):
    """Pallas equivalent of CritiGraph.get_score for a batch of (src, dst) pairs.

    locations_t: [tp, num_nodes] int32 -- the module's `self.locations` kept
    transposed outside the hot path so the endpoint gather lands directly in
    the kernel's lane-dense layout (no per-call transpose materialization).
    """
    assert h <= 23, "exponent-extraction bit_length requires XOR values < 2**24"
    assert lane_width % 128 == 0
    locations_t = locations_t.astype(jnp.int32)
    src = src.astype(jnp.int32)
    dst = dst.astype(jnp.int32)
    tp = locations_t.shape[0]
    N = src.shape[0]

    if use_pallas is None:
        use_pallas = N >= 4096   # launch + gather overhead dominates below this
    if not use_pallas:
        return _score_xla(locations_t, degree, src, dst,
                          eps=eps, gamma=gamma, alpha=alpha)

    LW = lane_width
    rows = max(_cdiv(N, LW), 1)
    rows8 = _round_up(rows, 8)

    # Block sizing: target a few MiB of HBM traffic per grid step (per-step
    # overhead ~0.35us), keep >=2 "parallel" steps when there is enough work
    # (v7x megacore), and stay well inside the 64 MiB v7x VMEM.
    bytes_per_edge = 2 * tp * 4 + 8                          # loc1 + loc2 + inv + out
    if max_block_edges is None:
        max_block_edges = max(8 * LW,
                              ((4 << 20) // bytes_per_edge) // (8 * LW) * (8 * LW))
    cap_rows = max(8, (max_block_edges // LW) // 8 * 8)

    if rows8 >= 16:
        nblocks = max(2, _cdiv(rows8, cap_rows))
        block_rows = min(cap_rows, _round_up(_cdiv(rows8, nblocks), 8))
    else:
        block_rows = rows8
    rows_p = _round_up(rows8, block_rows)
    Np = rows_p * LW
    grid = rows_p // block_rows

    # Pad the cheap index arrays, not the gathered [tp, N] tensors.  Dummy
    # index 0 is a valid node; padded lanes are never read back.
    pad = Np - N
    if pad:
        src_p = jnp.pad(src, (0, pad))
        dst_p = jnp.pad(dst, (0, pad))
    else:
        src_p, dst_p = src, dst

    # Endpoint gather along the last axis -> already [tp, Np]; reshape is free.
    loc1 = locations_t[:, src_p].reshape(tp, rows_p, LW)
    loc2 = locations_t[:, dst_p].reshape(tp, rows_p, LW)

    # Hoisted transcendentals: per-node log(degree+1); the tp-mean and per-edge
    # divide fold into a single multiplier so the kernel tail is mul/add only.
    log_degp1 = jnp.log(degree.astype(jnp.float32) + 1.0)           # [num_nodes]
    inv_logap = (1.0 / (tp * (log_degp1[src_p] + log_degp1[dst_p]))
                 ).reshape(rows_p, LW)

    per_step_bytes = (2 * tp + 2) * block_rows * LW * 4
    vmem_limit = int(min(max(3 * per_step_bytes, 16 << 20), 40 << 20))

    kernel = functools.partial(_score_kernel, eps_tp=float(eps) * tp,
                               gamma=gamma, inv_alpha=1.0 / float(alpha))
    out = pl.pallas_call(
        kernel,
        out_shape=jax.ShapeDtypeStruct((rows_p, LW), jnp.float32),
        grid_spec=pltpu.PrefetchScalarGridSpec(
            num_scalar_prefetch=0,
            grid=(grid,),
            in_specs=[
                pl.BlockSpec((tp, block_rows, LW), lambda i: (0, i, 0)),
                pl.BlockSpec((tp, block_rows, LW), lambda i: (0, i, 0)),
                pl.BlockSpec((block_rows, LW), lambda i: (i, 0)),
            ],
            out_specs=pl.BlockSpec((block_rows, LW), lambda i: (i, 0)),
        ),
        compiler_params=pltpu.CompilerParams(
            dimension_semantics=("parallel",),
            vmem_limit_bytes=vmem_limit,
        ),
    )(loc1, loc2, inv_logap)
    return out.reshape(-1)[:N]


if __name__ == "__main__":
    # Module hyper-params (deterministic, small).
    h = 10                  # bits per coordinate -> n = 2**h code space
    tp = 8                  # replicas per node
    eps = 0.1
    gamma = 2.0
    alpha = 1.0
    n = 1 << h

    num_nodes = 64
    num_pairs = 8000        # batch of (src, dst) pairs; exercises padding + 2 grid steps

    key = jax.random.PRNGKey(0)
    k_loc, k_deg, k_src, k_dst = jax.random.split(key, 4)

    # Deterministic synthetic "state" (self.locations / self.degree in the module).
    locations = jax.random.randint(k_loc, (num_nodes, tp), 0, n, dtype=jnp.int32)
    locations_t = locations.T   # kept transposed outside the hot path
    degree = jax.random.randint(k_deg, (num_nodes,), 1, 9, dtype=jnp.int32)
    src = jax.random.randint(k_src, (num_pairs,), 0, num_nodes, dtype=jnp.int32)
    dst = jax.random.randint(k_dst, (num_pairs,), 0, num_nodes, dtype=jnp.int32)

    scores = critigraph_score(locations_t, degree, src, dst,
                              h=h, eps=eps, gamma=gamma, alpha=alpha,
                              use_pallas=True)
    scores = jax.block_until_ready(scores)

    # Host-side float64 reference mirroring the PyTorch lookup-table math.
    loc_np = np.asarray(locations).astype(np.int64)
    deg_np = np.asarray(degree).astype(np.float64)
    s_np, d_np = np.asarray(src), np.asarray(dst)
    x_np = np.bitwise_xor(loc_np[s_np], loc_np[d_np])                 # [N, tp]
    dis_np = np.where(x_np == 0, 0.0,
                      np.floor(np.log2(np.maximum(x_np, 1))) + 1.0)
    dis_mean = dis_np.mean(axis=-1)
    ap = (deg_np[s_np] + 1.0) * (deg_np[d_np] + 1.0)
    aa = (dis_mean + eps) / np.log(ap)
    ref = 1.0 / (1.0 + aa ** gamma / alpha)

    np.testing.assert_allclose(np.asarray(scores, dtype=np.float64), ref,
                               rtol=2e-5, atol=2e-6)
    print("KERNEL_OK")
</pallas_src>

<mosaic_0001>
module attributes {stable_mosaic.version = 11 : i64} {
  func.func @_score_kernel(%arg0: i32, %arg1: memref<8x8x512xi32, #tpu.memory_space<vmem>>, %arg2: memref<8x8x512xi32, #tpu.memory_space<vmem>>, %arg3: memref<8x512xf32, #tpu.memory_space<vmem>>, %arg4: memref<8x512xf32, #tpu.memory_space<vmem>>) attributes {dimension_semantics = [#tpu.dimension_semantics<parallel>], iteration_bounds = array<i64: 2>, scalar_prefetch = 0 : i64, scratch_operands = 0 : i64, tpu.core_type = #tpu.core_type<tc>, window_params = [{transform_indices = @transform_0, window_bounds = array<i64: 8, 8, 512>}, {transform_indices = @transform_1, window_bounds = array<i64: 8, 8, 512>}, {transform_indices = @transform_2, window_bounds = array<i64: 8, 512>}, {transform_indices = @transform_3, window_bounds = array<i64: 8, 512>}]} {
    %c0 = arith.constant 0 : index
    %c0_0 = arith.constant 0 : index
    %c0_1 = arith.constant 0 : index
    %0 = vector.load %arg1[%c0, %c0_0, %c0_1] : memref<8x8x512xi32, #tpu.memory_space<vmem>>, vector<8x8x512xi32>
    %c0_2 = arith.constant 0 : index
    %c0_3 = arith.constant 0 : index
    %c0_4 = arith.constant 0 : index
    %1 = vector.load %arg2[%c0_2, %c0_3, %c0_4] : memref<8x8x512xi32, #tpu.memory_space<vmem>>, vector<8x8x512xi32>
    %2 = arith.xori %0, %1 : vector<8x8x512xi32>
    %3 = arith.sitofp %2 : vector<8x8x512xi32> to vector<8x8x512xf32>
    %4 = tpu.bitcast %3 : vector<8x8x512xf32> -> vector<8x8x512xi32>
    %c23_i32 = arith.constant 23 : i32
    %5 = vector.broadcast %c23_i32 : i32 to vector<8x8x512xi32>
    %6 = arith.shrsi %4, %5 : vector<8x8x512xi32>
    %c126_i32 = arith.constant 126 : i32
    %7 = vector.broadcast %c126_i32 : i32 to vector<8x8x512xi32>
    %8 = arith.subi %6, %7 : vector<8x8x512xi32>
    %c0_i32 = arith.constant 0 : i32
    %9 = vector.broadcast %c0_i32 : i32 to vector<8x8x512xi32>
    %10 = arith.maxsi %8, %9 : vector<8x8x512xi32>
    %cst = arith.constant dense<0> : vector<8x512xi32>
    %11 = vector.multi_reduction <add>, %10, %cst [0] : vector<8x8x512xi32> to vector<8x512xi32>
    %12 = arith.sitofp %11 : vector<8x512xi32> to vector<8x512xf32>
    %cst_5 = arith.constant 8.000000e-01 : f32
    %13 = vector.broadcast %cst_5 : f32 to vector<8x512xf32>
    %14 = arith.addf %12, %13 : vector<8x512xf32>
    %c0_6 = arith.constant 0 : index
    %c0_7 = arith.constant 0 : index
    %15 = vector.load %arg3[%c0_6, %c0_7] : memref<8x512xf32, #tpu.memory_space<vmem>>, vector<8x512xf32>
    %16 = arith.mulf %14, %15 : vector<8x512xf32>
    %17 = arith.mulf %16, %16 : vector<8x512xf32>
    %cst_8 = arith.constant 1.000000e+00 : f32
    %18 = vector.broadcast %cst_8 : f32 to vector<8x512xf32>
    %19 = arith.mulf %17, %18 : vector<8x512xf32>
    %cst_9 = arith.constant 1.000000e+00 : f32
    %20 = vector.broadcast %cst_9 : f32 to vector<8x512xf32>
    %21 = arith.addf %20, %19 : vector<8x512xf32>
    %cst_10 = arith.constant 1.000000e+00 : f32
    %22 = vector.broadcast %cst_10 : f32 to vector<8x512xf32>
    %23 = arith.divf %22, %21 : vector<8x512xf32>
    %c0_11 = arith.constant 0 : index
    %c0_12 = arith.constant 0 : index
    %24 = vector.load %arg4[%c0_11, %c0_12] : memref<8x512xf32, #tpu.memory_space<vmem>>, vector<8x512xf32>
    tpu.vector_store %arg4[%c0_11, %c0_12], %23 {strides = array<i32>} : memref<8x512xf32, #tpu.memory_space<vmem>>, vector<8x512xf32>,
    return
  }
  func.func @transform_0(%arg0: i32) -> (i32, i32, i32) {
    %c0_i32 = arith.constant 0 : i32
    %c0_i32_0 = arith.constant 0 : i32
    %c0_i32_1 = arith.constant 0 : i32
    return %c0_i32, %arg0, %c0_i32_0 : i32, i32, i32
  }
  func.func @transform_1(%arg0: i32) -> (i32, i32, i32) {
    %c0_i32 = arith.constant 0 : i32
    %c0_i32_0 = arith.constant 0 : i32
    %c0_i32_1 = arith.constant 0 : i32
    return %c0_i32, %arg0, %c0_i32_0 : i32, i32, i32
  }
  func.func @transform_2(%arg0: i32) -> (i32, i32) {
    %c0_i32 = arith.constant 0 : i32
    %c0_i32_0 = arith.constant 0 : i32
    return %arg0, %c0_i32 : i32, i32
  }
  func.func @transform_3(%arg0: i32) -> (i32, i32) {
    %c0_i32 = arith.constant 0 : i32
    %c0_i32_0 = arith.constant 0 : i32
    return %arg0, %c0_i32 : i32, i32
  }
}

</mosaic_0001>

<llo_original>
// kernel: tpu_custom_call.1
$region0: #{tpu_custom_call.1}
  #allocation0 [shape = 'u32[]', space=smem, size = 0x4, offset = 0x4, fixed_abs, tag = 'smem constant byte address 0x4 - core index']
  #allocation1 [shape = 'u32[144,128]{1,0:T(1,128)}', space=vmem, size = 0x12000, scoped, tag = 'internal scratch']
  %s0 = inlined_call_operand.hbm [shape: s32[8,16,512], index: 0, kind: input, shape index: {}]
  %s1 = inlined_call_operand.hbm [shape: s32[8,16,512], index: 1, kind: input, shape index: {}]
  %s2 = inlined_call_operand.hbm [shape: f32[16,512], index: 2, kind: input, shape index: {}]
  %s3 = inlined_call_operand.hbm [shape: f32[16,512], index: 3, kind: output, shape index: {}]
  %s4 = sld [smem:[#allocation0]]
  $region57: #{tpu_custom_call.1} parent=0
    _
  %s6 = ssub.s32 1, %s4
  %s7 = scalar_select 0, %s6, %s4
  $region1: #{tpu_custom_call.1} parent=0
    #allocation2 [shape = 'u8[262144]{0}', space=vmem, size = 0x40000, scoped, tag = 'input window, operand 0']
    #allocation3 [shape = 's32[2]{0}', space=sflag, size = 0x8, scoped, tag = 'scoped memory for tpu_custom_call.1']
    #allocation4 [shape = 's32[2]{0}', space=sflag, size = 0x8, scoped, tag = 'scoped memory for tpu_custom_call.1']
    #allocation5 [shape = 'u8[262144]{0}', space=vmem, size = 0x40000, scoped, tag = 'input window, operand 1']
    #allocation6 [shape = 's32[2]{0}', space=sflag, size = 0x8, scoped, tag = 'scoped memory for tpu_custom_call.1']
    #allocation7 [shape = 'u8[32768]{0}', space=vmem, size = 0x8000, scoped, tag = 'input window, operand 2']
    #allocation8 [shape = 'u8[32768]{0}', space=vmem, size = 0x8000, scoped, tag = 'output window, operand 0']
    %8 = vsyncpa [#allocation3], 0
    %s9 = scalar_lea.sflag [#allocation3], 1
    %10 = vsyncpa %s9, 0
    %11 = vsyncpa [#allocation6], 0
    %s12 = scalar_lea.sflag [#allocation6], 1
    %13 = vsyncpa %s12, 0
    %14 = vsyncpa [#allocation4], 0
    %s15 = scalar_lea.sflag [#allocation4], 1
    %16 = vsyncpa %s15, 0
    loop: start=0, step=1, limit=4
    $region2: #{tpu_custom_call.1} parent=1 // loop_pre_header
      _
    $region3: #{tpu_custom_call.1} parent=1 // loop_header
      %s18 = sphi 0, %s22
      %p19 = scmp.ge.s32.totalorder %s18, 4
      %s28 = sphi 0, %s30
      %s31 = sphi 0, %s28
      %s32 = sphi 0, %s31
      %s48 = sphi 0, %s32
      %s54 = sphi 0, %s56
      %s57 = sphi 0, %s54
      %s58 = sphi 0, %s57
      %s74 = sphi 0, %s58
      %s80 = sphi 0, %s82
      %s83 = sphi 0, %s80
      %s84 = sphi 0, %s83
      %s100 = sphi 0, %s84
      %s106 = sphi 0, %s108
      %s109 = sphi 0, %s106
      %s110 = sphi 0, %s109
      %s126 = sphi 0, %s110
    $region4: #{tpu_custom_call.1} parent=1 // loop_header_branch
      %21 = sbr.rel (%p19) target = $region8
    $region5: #{tpu_custom_call.1} parent=1 // loop_body
      %s23 = ssub.s32 %s18, 1
      %s24 = ssub.s32 %s18, 2
      %s25 = sadd.s32 %s18, 1
      %s26 = ssub.s32 %s18, %s25
      %p27 = scmp.eq.s32.totalorder %s26, 0
      %s29 = sadd.s32 %s28, 1
      %s30 = scalar_select %p27, %s28, %s29
      %p33 = pneg %p27
      %p34 = scmp.eq.s32.totalorder %s18, 1
      %p35 = por %p33, %p34
      %p36 = scmp.ne.s32.totalorder %s28, %s31
      %p37 = scmp.eq.s32.totalorder %s18, 0
      %p38 = por %p36, %p37
      %p39 = scmp.ne.s32.totalorder %s28, %s31
      %p40 = scmp.eq.s32.totalorder %s23, 1
      %p41 = por %p39, %p40
      %p42 = scmp.ne.s32.totalorder %s31, %s32
      %p43 = scmp.eq.s32.totalorder %s23, 0
      %p44 = por %p42, %p43
      %p45 = scmp.ne.s32.totalorder %s31, %s32
      %p46 = scmp.eq.s32.totalorder %s24, 1
      %p47 = por %p45, %p46
      %p49 = scmp.ne.s32.totalorder %s32, %s48
      %p50 = scmp.eq.s32.totalorder %s24, 0
      %p51 = por %p49, %p50
      %s52 = ssub.s32 %s18, %s25
      %p53 = scmp.eq.s32.totalorder %s52, 0
      %s55 = sadd.s32 %s54, 1
      %s56 = scalar_select %p53, %s54, %s55
      %p59 = pneg %p53
      %p60 = scmp.eq.s32.totalorder %s18, 1
      %p61 = por %p59, %p60
      %p62 = scmp.ne.s32.totalorder %s54, %s57
      %p63 = scmp.eq.s32.totalorder %s18, 0
      %p64 = por %p62, %p63
      %p65 = scmp.ne.s32.totalorder %s54, %s57
      %p66 = scmp.eq.s32.totalorder %s23, 1
      %p67 = por %p65, %p66
      %p68 = scmp.ne.s32.totalorder %s57, %s58
      %p69 = scmp.eq.s32.totalorder %s23, 0
      %p70 = por %p68, %p69
      %p71 = scmp.ne.s32.totalorder %s57, %s58
      %p72 = scmp.eq.s32.totalorder %s24, 1
      %p73 = por %p71, %p72
      %p75 = scmp.ne.s32.totalorder %s58, %s74
      %p76 = scmp.eq.s32.totalorder %s24, 0
      %p77 = por %p75, %p76
      %s78 = ssub.s32 %s18, %s25
      %p79 = scmp.eq.s32.totalorder %s78, 0
      %s81 = sadd.s32 %s80, 1
      %s82 = scalar_select %p79, %s80, %s81
      %p85 = pneg %p79
      %p86 = scmp.eq.s32.totalorder %s18, 1
      %p87 = por %p85, %p86
      %p88 = scmp.ne.s32.totalorder %s80, %s83
      %p89 = scmp.eq.s32.totalorder %s18, 0
      %p90 = por %p88, %p89
      %p91 = scmp.ne.s32.totalorder %s80, %s83
      %p92 = scmp.eq.s32.totalorder %s23, 1
      %p93 = por %p91, %p92
      %p94 = scmp.ne.s32.totalorder %s83, %s84
      %p95 = scmp.eq.s32.totalorder %s23, 0
      %p96 = por %p94, %p95
      %p97 = scmp.ne.s32.totalorder %s83, %s84
      %p98 = scmp.eq.s32.totalorder %s24, 1
      %p99 = por %p97, %p98
      %p101 = scmp.ne.s32.totalorder %s84, %s100
      %p102 = scmp.eq.s32.totalorder %s24, 0
      %p103 = por %p101, %p102
      %s104 = ssub.s32 %s18, %s25
      %p105 = scmp.eq.s32.totalorder %s104, 0
      %s107 = sadd.s32 %s106, 1
      %s108 = scalar_select %p105, %s106, %s107
      %p111 = pneg %p105
      %p112 = scmp.eq.s32.totalorder %s18, 1
      %p113 = por %p111, %p112
      %p114 = scmp.ne.s32.totalorder %s106, %s109
      %p115 = scmp.eq.s32.totalorder %s18, 0
      %p116 = por %p114, %p115
      %p117 = scmp.ne.s32.totalorder %s106, %s109
      %p118 = scmp.eq.s32.totalorder %s23, 1
      %p119 = por %p117, %p118
      %p120 = scmp.ne.s32.totalorder %s109, %s110
      %p121 = scmp.eq.s32.totalorder %s23, 0
      %p122 = por %p120, %p121
      %p123 = scmp.ne.s32.totalorder %s109, %s110
      %p124 = scmp.eq.s32.totalorder %s24, 1
      %p125 = por %p123, %p124
      %p127 = scmp.ne.s32.totalorder %s110, %s126
      %p128 = scmp.eq.s32.totalorder %s24, 0
      %p129 = por %p127, %p128
      %p130 = scmp.le.s32.totalorder 1, %s18
      %p131 = scmp.lt.s32.totalorder %s18, 3
      %p132 = pnand %p130, %p131
      %p133 = pneg %p132
      // Predicated region
      $region9: #{tpu_custom_call.1} parent=5 // pred_check
        _
      $region10: #{tpu_custom_call.1} parent=5 // pred_check_branch
        %135 = sbr.rel (%p132) target = $region12
      $region11: #{tpu_custom_call.1} parent=5 // pred_region
        %s136 = ssub.s32 %s18, 1
      $region12: #{tpu_custom_call.1} parent=5 // pred_fallthru
        _
      %p137 = scmp.lt.s32.totalorder %s18, 2
      // Predicated region
      $region13: #{tpu_custom_call.1} parent=5 // pred_check
        %p138 = pneg %p137
      $region14: #{tpu_custom_call.1} parent=5 // pred_check_branch
        %140 = sbr.rel (%p138) target = $region16
      $region15: #{tpu_custom_call.1} parent=5 // pred_region
        // Predicated region
        $region17: #{tpu_custom_call.1} parent=15 // pred_check
          %p141 = pneg %p38
        $region18: #{tpu_custom_call.1} parent=15 // pred_check_branch
          %143 = sbr.rel (%p141) target = $region20
        $region19: #{tpu_custom_call.1} parent=15 // pred_region
          %s144 = sand.u32 %s28, 1
          %s145 = scalar_lea.sflag [#allocation3], %s144
          %s146 = sand.u32 %s28, 1
          %s147 = smul.addr %s146, 256
          %s148 = scalar_lea.vmem [#allocation2], %s147
          %s150 = ssub.s32 4096, 4096
          %151 = vsyncadd %s145, %s150
          %s152 = smul.addr %s18, 4
          %s153 = smul.addr %s152, 128
          %s154 = scalar_lea.hbm %s0, %s153
          %s155 = sshll.u32 %s148, 4
          %s156 = int_to_ptr.vmem [resolvable:$true] %s155
          %161 = dma.hbm_to_vmem [thread:$0]  %s154, 4096, %s156, %s145, 1024, 512, 32
        $region20: #{tpu_custom_call.1} parent=15 // pred_fallthru
          _
        // Predicated region
        $region21: #{tpu_custom_call.1} parent=15 // pred_check
          %p162 = pneg %p64
        $region22: #{tpu_custom_call.1} parent=15 // pred_check_branch
          %164 = sbr.rel (%p162) target = $region24
        $region23: #{tpu_custom_call.1} parent=15 // pred_region
          %s165 = sand.u32 %s18, 1
          %s166 = scalar_lea.sflag [#allocation6], %s165
          %s167 = sand.u32 %s54, 1
          %s168 = smul.addr %s167, 256
          %s169 = scalar_lea.vmem [#allocation5], %s168
          %s171 = ssub.s32 4096, 4096
          %172 = vsyncadd %s166, %s171
          %s173 = smul.addr %s18, 4
          %s174 = smul.addr %s173, 128
          %s175 = scalar_lea.hbm %s1, %s174
          %s176 = sshll.u32 %s169, 4
          %s177 = int_to_ptr.vmem [resolvable:$true] %s176
          %182 = dma.hbm_to_vmem [thread:$0]  %s175, 4096, %s177, %s166, 1024, 512, 32
        $region24: #{tpu_custom_call.1} parent=15 // pred_fallthru
          _
        // Predicated region
        $region25: #{tpu_custom_call.1} parent=15 // pred_check
          %p183 = pneg %p90
        $region26: #{tpu_custom_call.1} parent=15 // pred_check_branch
          %185 = sbr.rel (%p183) target = $region28
        $region27: #{tpu_custom_call.1} parent=15 // pred_region
          %s186 = sand.u32 %s18, 1
          %s187 = scalar_lea.sflag [#allocation6], %s186
          %s188 = sand.u32 %s80, 1
          %s189 = smul.addr %s188, 32
          %s190 = scalar_lea.vmem [#allocation7], %s189
          %s192 = ssub.s32 512, 512
          %193 = vsyncadd %s187, %s192
          %s194 = smul.addr %s18, 4
          %s195 = smul.addr %s194, 128
          %s196 = scalar_lea.hbm %s2, %s195
          %s198 = sshll.u32 %s190, 4
          %s199 = int_to_ptr.vmem [resolvable:$true] %s198
          %201 = dma.hbm_to_vmem [thread:$0]  %s196, 512, %s199, %s187
        $region28: #{tpu_custom_call.1} parent=15 // pred_fallthru
          _
      $region16: #{tpu_custom_call.1} parent=5 // pred_fallthru
        _
      %p202 = scmp.le.s32.totalorder 1, %s18
      %p203 = scmp.lt.s32.totalorder %s18, 3
      %p204 = pnand %p202, %p203
      %p205 = pneg %p204
      // Predicated region
      $region29: #{tpu_custom_call.1} parent=5 // pred_check
        _
      $region30: #{tpu_custom_call.1} parent=5 // pred_check_branch
        %207 = sbr.rel (%p204) target = $region32
      $region31: #{tpu_custom_call.1} parent=5 // pred_region
        %s208 = ssub.s32 %s18, 1
        %s209 = sand.u32 %s31, 1
        %s210 = scalar_lea.sflag [#allocation3], %s209
        %s211 = sand.u32 %s31, 1
        %s212 = smul.addr %s211, 256
        %s213 = scalar_lea.vmem [#allocation2], %s212
        // Predicated region
        $region33: #{tpu_custom_call.1} parent=31 // pred_check
          %p214 = pneg %p44
        $region34: #{tpu_custom_call.1} parent=31 // pred_check_branch
          %216 = sbr.rel (%p214) target = $region36
        $region35: #{tpu_custom_call.1} parent=31 // pred_region
          %217 = dma.done %s210, 4096
        $region36: #{tpu_custom_call.1} parent=31 // pred_fallthru
          _
        %s218 = sand.u32 %s23, 1
        %s219 = scalar_lea.sflag [#allocation6], %s218
        %s220 = sand.u32 %s57, 1
        %s221 = smul.addr %s220, 256
        %s222 = scalar_lea.vmem [#allocation5], %s221
        // Predicated region
        $region37: #{tpu_custom_call.1} parent=31 // pred_check
          %p223 = pneg %p70
        $region38: #{tpu_custom_call.1} parent=31 // pred_check_branch
          %225 = sbr.rel (%p223) target = $region40
        $region39: #{tpu_custom_call.1} parent=31 // pred_region
          %226 = dma.done %s219, 4096
        $region40: #{tpu_custom_call.1} parent=31 // pred_fallthru
          _
        %s227 = sand.u32 %s23, 1
        %s228 = scalar_lea.sflag [#allocation6], %s227
        %s229 = sand.u32 %s83, 1
        %s230 = smul.addr %s229, 32
        %s231 = scalar_lea.vmem [#allocation7], %s230
        // Predicated region
        $region41: #{tpu_custom_call.1} parent=31 // pred_check
          %p232 = pneg %p96
        $region42: #{tpu_custom_call.1} parent=31 // pred_check_branch
          %234 = sbr.rel (%p232) target = $region44
        $region43: #{tpu_custom_call.1} parent=31 // pred_region
          %235 = dma.done %s228, 512
        $region44: #{tpu_custom_call.1} parent=31 // pred_fallthru
          _
        %s236 = sand.u32 %s31, 1
        %s237 = scalar_lea.sflag [#allocation3], %s236
        %s238 = sand.u32 %s31, 1
        %s239 = smul.addr %s238, 256
        %s240 = scalar_lea.vmem [#allocation2], %s239
        %p241 = pneg %p44
        %p242 = pneg %p41
        %s243 = sand.u32 %s23, 1
        %s244 = scalar_lea.sflag [#allocation6], %s243
        %s245 = sand.u32 %s57, 1
        %s246 = smul.addr %s245, 256
        %s247 = scalar_lea.vmem [#allocation5], %s246
        %p248 = pneg %p70
        %p249 = pneg %p67
        %s250 = sand.u32 %s23, 1
        %s251 = scalar_lea.sflag [#allocation6], %s250
        %s252 = sand.u32 %s83, 1
        %s253 = smul.addr %s252, 32
        %s254 = scalar_lea.vmem [#allocation7], %s253
        %p255 = pneg %p96
        %p256 = pneg %p93
        %p257 = pneg %p122
        %p258 = pneg %p119
        %s259 = sand.u32 %s109, 1
        %s260 = scalar_lea.sflag [#allocation4], %s259
        %s261 = sand.u32 %s109, 1
        %s262 = smul.addr %s261, 32
        %s263 = scalar_lea.vmem [#allocation8], %s262
        %v264 = vld [vmem:[%s213] sm:$0xff]
        %v265 = vld [vmem:[%s213 + $0x8] sm:$0xff]
        %v266 = vld [vmem:[%s213 + $0x10] sm:$0xff]
        %v267 = vld [vmem:[%s213 + $0x18] sm:$0xff]
        %v268 = vld [vmem:[%s213 + $0x20] sm:$0xff]
        %v269 = vld [vmem:[%s213 + $0x28] sm:$0xff]
        %v270 = vld [vmem:[%s213 + $0x30] sm:$0xff]
        %v271 = vld [vmem:[%s213 + $0x38] sm:$0xff]
        %v272 = vld [vmem:[%s213 + $0x40] sm:$0xff]
        %v273 = vld [vmem:[%s213 + $0x48] sm:$0xff]
        %v274 = vld [vmem:[%s213 + $0x50] sm:$0xff]
        %v275 = vld [vmem:[%s213 + $0x58] sm:$0xff]
        %v276 = vld [vmem:[%s213 + $0x60] sm:$0xff]
        %v277 = vld [vmem:[%s213 + $0x68] sm:$0xff]
        %v278 = vld [vmem:[%s213 + $0x70] sm:$0xff]
        %v279 = vld [vmem:[%s213 + $0x78] sm:$0xff]
        %v280 = vld [vmem:[%s213 + $0x80] sm:$0xff]
        %v281 = vld [vmem:[%s213 + $0x88] sm:$0xff]
        %v282 = vld [vmem:[%s213 + $0x90] sm:$0xff]
        %v283 = vld [vmem:[%s213 + $0x98] sm:$0xff]
        %v284 = vld [vmem:[%s213 + $0xa0] sm:$0xff]
        %v285 = vld [vmem:[%s213 + $0xa8] sm:$0xff]
        %v286 = vld [vmem:[%s213 + $0xb0] sm:$0xff]
        %v287 = vld [vmem:[%s213 + $0xb8] sm:$0xff]
        %v288 = vld [vmem:[%s213 + $0xc0] sm:$0xff]
        %v289 = vld [vmem:[%s213 + $0xc8] sm:$0xff]
        %v290 = vld [vmem:[%s213 + $0xd0] sm:$0xff]
        %v291 = vld [vmem:[%s213 + $0xd8] sm:$0xff]
        %v292 = vld [vmem:[%s213 + $0xe0] sm:$0xff]
        %v293 = vld [vmem:[%s213 + $0xe8] sm:$0xff]
        %v294 = vld [vmem:[%s213 + $0xf0] sm:$0xff]
        %v295 = vld [vmem:[%s213 + $0xf8] sm:$0xff]
        %v296 = vld [vmem:[%s222] sm:$0xff]
        %v297 = vld [vmem:[%s222 + $0x8] sm:$0xff]
        %v298 = vld [vmem:[%s222 + $0x10] sm:$0xff]
        %v299 = vld [vmem:[%s222 + $0x18] sm:$0xff]
        %v300 = vld [vmem:[%s222 + $0x20] sm:$0xff]
        %v301 = vld [vmem:[%s222 + $0x28] sm:$0xff]
        %v302 = vld [vmem:[%s222 + $0x30] sm:$0xff]
        %v303 = vld [vmem:[%s222 + $0x38] sm:$0xff]
        %v304 = vld [vmem:[%s222 + $0x40] sm:$0xff]
        %v305 = vld [vmem:[%s222 + $0x48] sm:$0xff]
        %v306 = vld [vmem:[%s222 + $0x50] sm:$0xff]
        %v307 = vld [vmem:[%s222 + $0x58] sm:$0xff]
        %v308 = vld [vmem:[%s222 + $0x60] sm:$0xff]
        %v309 = vld [vmem:[%s222 + $0x68] sm:$0xff]
        %v310 = vld [vmem:[%s222 + $0x70] sm:$0xff]
        %v311 = vld [vmem:[%s222 + $0x78] sm:$0xff]
        %v312 = vld [vmem:[%s222 + $0x80] sm:$0xff]
        %v313 = vld [vmem:[%s222 + $0x88] sm:$0xff]
        %v314 = vld [vmem:[%s222 + $0x90] sm:$0xff]
        %v315 = vld [vmem:[%s222 + $0x98] sm:$0xff]
        %v316 = vld [vmem:[%s222 + $0xa0] sm:$0xff]
        %v317 = vld [vmem:[%s222 + $0xa8] sm:$0xff]
        %v318 = vld [vmem:[%s222 + $0xb0] sm:$0xff]
        %v319 = vld [vmem:[%s222 + $0xb8] sm:$0xff]
        %v320 = vld [vmem:[%s222 + $0xc0] sm:$0xff]
        %v321 = vld [vmem:[%s222 + $0xc8] sm:$0xff]
        %v322 = vld [vmem:[%s222 + $0xd0] sm:$0xff]
        %v323 = vld [vmem:[%s222 + $0xd8] sm:$0xff]
        %v324 = vld [vmem:[%s222 + $0xe0] sm:$0xff]
        %v325 = vld [vmem:[%s222 + $0xe8] sm:$0xff]
        %v326 = vld [vmem:[%s222 + $0xf0] sm:$0xff]
        %v327 = vld [vmem:[%s222 + $0xf8] sm:$0xff]
        %v328 = vxor.u32 %v264, %v296
        %v329 = vxor.u32 %v265, %v297
        %v330 = vxor.u32 %v266, %v298
        %v331 = vxor.u32 %v267, %v299
        %v332 = vxor.u32 %v268, %v300
        %v333 = vxor.u32 %v269, %v301
        %v334 = vxor.u32 %v270, %v302
        %v335 = vxor.u32 %v271, %v303
        %v336 = vxor.u32 %v272, %v304
        %v337 = vxor.u32 %v273, %v305
        %v338 = vxor.u32 %v274, %v306
        %v339 = vxor.u32 %v275, %v307
        %v340 = vxor.u32 %v276, %v308
        %v341 = vxor.u32 %v277, %v309
        %v342 = vxor.u32 %v278, %v310
        %v343 = vxor.u32 %v279, %v311
        %v344 = vxor.u32 %v280, %v312
        %v345 = vxor.u32 %v281, %v313
        %v346 = vxor.u32 %v282, %v314
        %v347 = vxor.u32 %v283, %v315
        %v348 = vxor.u32 %v284, %v316
        %v349 = vxor.u32 %v285, %v317
        %v350 = vxor.u32 %v286, %v318
        %v351 = vxor.u32 %v287, %v319
        %v352 = vxor.u32 %v288, %v320
        %v353 = vxor.u32 %v289, %v321
        %v354 = vxor.u32 %v290, %v322
        %v355 = vxor.u32 %v291, %v323
        %v356 = vxor.u32 %v292, %v324
        %v357 = vxor.u32 %v293, %v325
        %v358 = vxor.u32 %v294, %v326
        %v359 = vxor.u32 %v295, %v327
        %v360 = vcvt.s32.f32 %v328
        %v361 = vcvt.s32.f32 %v329
        %v362 = vcvt.s32.f32 %v330
        %v363 = vcvt.s32.f32 %v331
        %v364 = vcvt.s32.f32 %v332
        %v365 = vcvt.s32.f32 %v333
        %v366 = vcvt.s32.f32 %v334
        %v367 = vcvt.s32.f32 %v335
        %v368 = vcvt.s32.f32 %v336
        %v369 = vcvt.s32.f32 %v337
        %v370 = vcvt.s32.f32 %v338
        %v371 = vcvt.s32.f32 %v339
        %v372 = vcvt.s32.f32 %v340
        %v373 = vcvt.s32.f32 %v341
        %v374 = vcvt.s32.f32 %v342
        %v375 = vcvt.s32.f32 %v343
        %v376 = vcvt.s32.f32 %v344
        %v377 = vcvt.s32.f32 %v345
        %v378 = vcvt.s32.f32 %v346
        %v379 = vcvt.s32.f32 %v347
        %v380 = vcvt.s32.f32 %v348
        %v381 = vcvt.s32.f32 %v349
        %v382 = vcvt.s32.f32 %v350
        %v383 = vcvt.s32.f32 %v351
        %v384 = vcvt.s32.f32 %v352
        %v385 = vcvt.s32.f32 %v353
        %v386 = vcvt.s32.f32 %v354
        %v387 = vcvt.s32.f32 %v355
        %v388 = vcvt.s32.f32 %v356
        %v389 = vcvt.s32.f32 %v357
        %v390 = vcvt.s32.f32 %v358
        %v391 = vcvt.s32.f32 %v359
        %v424 = vshra.s32 %v360, 23
        %v425 = vshra.s32 %v361, 23
        %v426 = vshra.s32 %v362, 23
        %v427 = vshra.s32 %v363, 23
        %v428 = vshra.s32 %v364, 23
        %v429 = vshra.s32 %v365, 23
        %v430 = vshra.s32 %v366, 23
        %v431 = vshra.s32 %v367, 23
        %v432 = vshra.s32 %v368, 23
        %v433 = vshra.s32 %v369, 23
        %v434 = vshra.s32 %v370, 23
        %v435 = vshra.s32 %v371, 23
        %v436 = vshra.s32 %v372, 23
        %v437 = vshra.s32 %v373, 23
        %v438 = vshra.s32 %v374, 23
        %v439 = vshra.s32 %v375, 23
        %v440 = vshra.s32 %v376, 23
        %v441 = vshra.s32 %v377, 23
        %v442 = vshra.s32 %v378, 23
        %v443 = vshra.s32 %v379, 23
        %v444 = vshra.s32 %v380, 23
        %v445 = vshra.s32 %v381, 23
        %v446 = vshra.s32 %v382, 23
        %v447 = vshra.s32 %v383, 23
        %v448 = vshra.s32 %v384, 23
        %v449 = vshra.s32 %v385, 23
        %v450 = vshra.s32 %v386, 23
        %v451 = vshra.s32 %v387, 23
        %v452 = vshra.s32 %v388, 23
        %v453 = vshra.s32 %v389, 23
        %v454 = vshra.s32 %v390, 23
        %v455 = vshra.s32 %v391, 23
        %v456 = vsub.s32 %v424, 126
        %v457 = vsub.s32 %v425, 126
        %v458 = vsub.s32 %v426, 126
        %v459 = vsub.s32 %v427, 126
        %v460 = vsub.s32 %v428, 126
        %v461 = vsub.s32 %v429, 126
        %v462 = vsub.s32 %v430, 126
        %v463 = vsub.s32 %v431, 126
        %v464 = vsub.s32 %v432, 126
        %v465 = vsub.s32 %v433, 126
        %v466 = vsub.s32 %v434, 126
        %v467 = vsub.s32 %v435, 126
        %v468 = vsub.s32 %v436, 126
        %v469 = vsub.s32 %v437, 126
        %v470 = vsub.s32 %v438, 126
        %v471 = vsub.s32 %v439, 126
        %v472 = vsub.s32 %v440, 126
        %v473 = vsub.s32 %v441, 126
        %v474 = vsub.s32 %v442, 126
        %v475 = vsub.s32 %v443, 126
        %v476 = vsub.s32 %v444, 126
        %v477 = vsub.s32 %v445, 126
        %v478 = vsub.s32 %v446, 126
        %v479 = vsub.s32 %v447, 126
        %v480 = vsub.s32 %v448, 126
        %v481 = vsub.s32 %v449, 126
        %v482 = vsub.s32 %v450, 126
        %v483 = vsub.s32 %v451, 126
        %v484 = vsub.s32 %v452, 126
        %v485 = vsub.s32 %v453, 126
        %v486 = vsub.s32 %v454, 126
        %v487 = vsub.s32 %v455, 126
        %vm488 = vcmp.gt.s32.totalorder %v456, 0
        %v489 = vsel %vm488, %v456, 0
        %vm490 = vcmp.gt.s32.totalorder %v457, 0
        %v491 = vsel %vm490, %v457, 0
        %vm492 = vcmp.gt.s32.totalorder %v458, 0
        %v493 = vsel %vm492, %v458, 0
        %vm494 = vcmp.gt.s32.totalorder %v459, 0
        %v495 = vsel %vm494, %v459, 0
        %vm496 = vcmp.gt.s32.totalorder %v460, 0
        %v497 = vsel %vm496, %v460, 0
        %vm498 = vcmp.gt.s32.totalorder %v461, 0
        %v499 = vsel %vm498, %v461, 0
        %vm500 = vcmp.gt.s32.totalorder %v462, 0
        %v501 = vsel %vm500, %v462, 0
        %vm502 = vcmp.gt.s32.totalorder %v463, 0
        %v503 = vsel %vm502, %v463, 0
        %vm504 = vcmp.gt.s32.totalorder %v464, 0
        %v505 = vsel %vm504, %v464, 0
        %vm506 = vcmp.gt.s32.totalorder %v465, 0
        %v507 = vsel %vm506, %v465, 0
        %vm508 = vcmp.gt.s32.totalorder %v466, 0
        %v509 = vsel %vm508, %v466, 0
        %vm510 = vcmp.gt.s32.totalorder %v467, 0
        %v511 = vsel %vm510, %v467, 0
        %vm512 = vcmp.gt.s32.totalorder %v468, 0
        %v513 = vsel %vm512, %v468, 0
        %vm514 = vcmp.gt.s32.totalorder %v469, 0
        %v515 = vsel %vm514, %v469, 0
        %vm516 = vcmp.gt.s32.totalorder %v470, 0
        %v517 = vsel %vm516, %v470, 0
        %vm518 = vcmp.gt.s32.totalorder %v471, 0
        %v519 = vsel %vm518, %v471, 0
        %vm520 = vcmp.gt.s32.totalorder %v472, 0
        %v521 = vsel %vm520, %v472, 0
        %vm522 = vcmp.gt.s32.totalorder %v473, 0
        %v523 = vsel %vm522, %v473, 0
        %vm524 = vcmp.gt.s32.totalorder %v474, 0
        %v525 = vsel %vm524, %v474, 0
        %vm526 = vcmp.gt.s32.totalorder %v475, 0
        %v527 = vsel %vm526, %v475, 0
        %vm528 = vcmp.gt.s32.totalorder %v476, 0
        %v529 = vsel %vm528, %v476, 0
        %vm530 = vcmp.gt.s32.totalorder %v477, 0
        %v531 = vsel %vm530, %v477, 0
        %vm532 = vcmp.gt.s32.totalorder %v478, 0
        %v533 = vsel %vm532, %v478, 0
        %vm534 = vcmp.gt.s32.totalorder %v479, 0
        %v535 = vsel %vm534, %v479, 0
        %vm536 = vcmp.gt.s32.totalorder %v480, 0
        %v537 = vsel %vm536, %v480, 0
        %vm538 = vcmp.gt.s32.totalorder %v481, 0
        %v539 = vsel %vm538, %v481, 0
        %vm540 = vcmp.gt.s32.totalorder %v482, 0
        %v541 = vsel %vm540, %v482, 0
        %vm542 = vcmp.gt.s32.totalorder %v483, 0
        %v543 = vsel %vm542, %v483, 0
        %vm544 = vcmp.gt.s32.totalorder %v484, 0
        %v545 = vsel %vm544, %v484, 0
        %vm546 = vcmp.gt.s32.totalorder %v485, 0
        %v547 = vsel %vm546, %v485, 0
        %vm548 = vcmp.gt.s32.totalorder %v486, 0
        %v549 = vsel %vm548, %v486, 0
        %vm550 = vcmp.gt.s32.totalorder %v487, 0
        %v551 = vsel %vm550, %v487, 0
        %v552 = vadd.s32 %v489, %v497
        %v553 = vadd.s32 %v552, %v505
        %v554 = vadd.s32 %v553, %v513
        %v555 = vadd.s32 %v554, %v521
        %v556 = vadd.s32 %v555, %v529
        %v557 = vadd.s32 %v556, %v537
        %v558 = vadd.s32 %v557, %v545
        %v559 = vadd.s32 %v491, %v499
        %v560 = vadd.s32 %v559, %v507
        %v561 = vadd.s32 %v560, %v515
        %v562 = vadd.s32 %v561, %v523
        %v563 = vadd.s32 %v562, %v531
        %v564 = vadd.s32 %v563, %v539
        %v565 = vadd.s32 %v564, %v547
        %v566 = vadd.s32 %v493, %v501
        %v567 = vadd.s32 %v566, %v509
        %v568 = vadd.s32 %v567, %v517
        %v569 = vadd.s32 %v568, %v525
        %v570 = vadd.s32 %v569, %v533
        %v571 = vadd.s32 %v570, %v541
        %v572 = vadd.s32 %v571, %v549
        %v573 = vadd.s32 %v495, %v503
        %v574 = vadd.s32 %v573, %v511
        %v575 = vadd.s32 %v574, %v519
        %v576 = vadd.s32 %v575, %v527
        %v577 = vadd.s32 %v576, %v535
        %v578 = vadd.s32 %v577, %v543
        %v579 = vadd.s32 %v578, %v551
        %v580 = vcvt.s32.f32 %v558
        %v581 = vcvt.s32.f32 %v565
        %v582 = vcvt.s32.f32 %v572
        %v583 = vcvt.s32.f32 %v579
        %v584 = vadd.f32 %v580, 0.8
        %v585 = vadd.f32 %v581, 0.8
        %v586 = vadd.f32 %v582, 0.8
        %v587 = vadd.f32 %v583, 0.8
        %v588 = vld [vmem:[%s231] sm:$0xff]
        %v589 = vld [vmem:[%s231 + $0x8] sm:$0xff]
        %v590 = vld [vmem:[%s231 + $0x10] sm:$0xff]
        %v591 = vld [vmem:[%s231 + $0x18] sm:$0xff]
        %v592 = vmul.f32 %v584, %v588
        %v593 = vmul.f32 %v585, %v589
        %v594 = vmul.f32 %v586, %v590
        %v595 = vmul.f32 %v587, %v591
        %v596 = vmul.f32 %v592, %v592
        %v597 = vmul.f32 %v593, %v593
        %v598 = vmul.f32 %v594, %v594
        %v599 = vmul.f32 %v595, %v595
        %v600 = vadd.f32 %v596, 1.0
        %v601 = vadd.f32 %v597, 1.0
        %v602 = vadd.f32 %v598, 1.0
        %v603 = vadd.f32 %v599, 1.0
        %v604 = vrcp.pop %v600
        %v605 = vmul.f32 1.0, %v604
        %v606 = vrcp.pop %v601
        %v607 = vmul.f32 1.0, %v606
        %v608 = vrcp.pop %v602
        %v609 = vmul.f32 1.0, %v608
        %v610 = vrcp.pop %v603
        %v611 = vmul.f32 1.0, %v610
        %612 = vst [vmem:[%s263] sm:$0xff] %v605
        %613 = vst [vmem:[%s263 + $0x8] sm:$0xff] %v607
        %614 = vst [vmem:[%s263 + $0x10] sm:$0xff] %v609
        %615 = vst [vmem:[%s263 + $0x18] sm:$0xff] %v611
        %s616 = sand.u32 %s109, 1
        %s617 = scalar_lea.sflag [#allocation4], %s616
        %s618 = sand.u32 %s109, 1
        %s619 = smul.addr %s618, 32
        %s620 = scalar_lea.vmem [#allocation8], %s619
        // Predicated region
        $region45: #{tpu_custom_call.1} parent=31 // pred_check
          %p621 = pneg %p119
        $region46: #{tpu_custom_call.1} parent=31 // pred_check_branch
          %623 = sbr.rel (%p621) target = $region48
        $region47: #{tpu_custom_call.1} parent=31 // pred_region
          %s625 = ssub.s32 512, 512
          %626 = vsyncadd %s617, %s625
          %s627 = smul.addr %s23, 4
          %s628 = smul.addr %s627, 128
          %s629 = scalar_lea.hbm %s3, %s628
          %s631 = sshll.u32 %s620, 4
          %s632 = int_to_ptr.vmem [resolvable:$true] %s631
          %634 = dma.vmem_to_hbm [thread:$0]  %s632, 512, %s629, %s617
        $region48: #{tpu_custom_call.1} parent=31 // pred_fallthru
          _
      $region32: #{tpu_custom_call.1} parent=5 // pred_fallthru
        _
      %p635 = scmp.le.s32.totalorder 2, %s18
      // Predicated region
      $region49: #{tpu_custom_call.1} parent=5 // pred_check
        %p636 = pneg %p635
      $region50: #{tpu_custom_call.1} parent=5 // pred_check_branch
        %638 = sbr.rel (%p636) target = $region52
      $region51: #{tpu_custom_call.1} parent=5 // pred_region
        %s639 = ssub.s32 %s18, 2
        // Predicated region
        $region53: #{tpu_custom_call.1} parent=51 // pred_check
          %p640 = pneg %p125
        $region54: #{tpu_custom_call.1} parent=51 // pred_check_branch
          %642 = sbr.rel (%p640) target = $region56
        $region55: #{tpu_custom_call.1} parent=51 // pred_region
          %s643 = sand.u32 %s110, 1
          %s644 = scalar_lea.sflag [#allocation4], %s643
          %s645 = sand.u32 %s110, 1
          %s646 = smul.addr %s645, 32
          %s647 = scalar_lea.vmem [#allocation8], %s646
          %648 = dma.done %s644, 512
        $region56: #{tpu_custom_call.1} parent=51 // pred_fallthru
          _
      $region52: #{tpu_custom_call.1} parent=5 // pred_fallthru
        _
    $region6: #{tpu_custom_call.1} parent=1 // loop_footer
      %s22 = sadd.s32 1, %s18
    $region7: #{tpu_custom_call.1} parent=1 // loop_footer_branch
      %17 = sbr.rel target = $region3
    $region8: #{tpu_custom_call.1} parent=1 // loop_exit
      _
    %649 = vsyncpa [#allocation3], 1
    %s650 = scalar_lea.sflag [#allocation3], 1
    %651 = vsyncpa %s650, 1
    %652 = vsyncpa [#allocation6], 1
    %s653 = scalar_lea.sflag [#allocation6], 1
    %654 = vsyncpa %s653, 1
    %655 = vsyncpa [#allocation4], 1
    %s656 = scalar_lea.sflag [#allocation4], 1
    %657 = vsyncpa %s656, 1

</llo_original>
